<compile_context>
chip_gen: v7x
topology: tpu7x:2x2x1
jax: 0.10.0
libtpu: 0.0.40
codegen_flags: <defaults>
</compile_context>

<pallas_src>
import functools
import math

import jax
import jax.numpy as jnp
from jax.experimental import pallas as pl
from jax.experimental.pallas import tpu as pltpu


def _round_up(v, m):
    return ((v + m - 1) // m) * m


def _codebook_kernel(x_ref, wf_ref, b_ref, cbp_ref, segp_ref, out_ref, *,
                     num_codebooks, num_codes, gc_pad, out_dims):
    """One grid step processes a (TM, in_dims) tile of tokens.

    Output layout (lane-dense, width OUT_PAD = round_up(out_dims + G, 128)):
      cols [0, out_dims)             : emb
      cols [out_dims, out_dims + G)  : per-codebook cross-entropy loss
    """
    G, C, GCp = num_codebooks, num_codes, gc_pad

    # Fused projection: [proj | weight_proj] in one bf16 MXU pass.  x is cast
    # to bf16 here (hidden under the matmul) instead of in the wrapper.
    xb = x_ref[...].astype(jnp.bfloat16)
    y = jnp.dot(xb, wf_ref[...], preferred_element_type=jnp.float32)
    y = y + b_ref[...]                                    # (TM, GCp + G) f32
    xp = y[:, :GCp]                                       # code logits, 128-aligned view
    wl = y[:, GCp:]                                       # weight logits (TM, G), aligned start

    # softmax over the G codebooks (tiny (TM, G) slab, exact divide).
    wl = wl - jnp.max(wl, axis=-1, keepdims=True)
    we = jnp.exp(wl)
    xw = we / jnp.sum(we, axis=-1, keepdims=True)         # (TM, G) f32

    # Per-group max + broadcast of (max, softmax weight) to the group's lanes.
    # Select-based broadcast keeps m_full bit-exact (needed for both the
    # argmax one-hot and the CE loss); an MXU seg^T broadcast is not exact
    # for f32 and could drop the argmax column entirely.
    col = jax.lax.broadcasted_iota(jnp.int32, (1, GCp), 1)    # hoisted once
    m_full = jnp.zeros_like(xp)     # zero init is safe: groups partition [0, G*C)
    xw_full = jnp.zeros_like(xp)
    for g in range(G):              # static unroll; G is small
        in_g = (col >= g * C) & (col < (g + 1) * C)
        m_g = jnp.max(jnp.where(in_g, xp, -jnp.inf), axis=-1, keepdims=True)
        m_full = jnp.where(in_g, m_g, m_full)
        xw_full = jnp.where(in_g, xw[:, g:g + 1], xw_full)

    # Weighted one-hot of the per-group argmax and the shifted exponentials.
    # TODO(synk): exact ties select every maximal code (torch argmax keeps the first).
    w1h = jnp.where(xp >= m_full, xw_full, 0.0)           # (TM, GCp) f32
    p = jnp.exp(xp - m_full)                              # (TM, GCp), values in (0, 1]

    # Two MXU passes land both results directly in lane-dense output columns
    # (no concatenate, no narrow masked stores):
    #   emb  = w1h @ codebook_rows    (bf16) -> cols [0, out_dims)
    #   sums = p   @ group_indicator  (f32)  -> cols [out_dims, out_dims + G)
    r = jnp.dot(w1h.astype(jnp.bfloat16), cbp_ref[...],
                preferred_element_type=jnp.float32)
    r = r + jnp.dot(p, segp_ref[...], preferred_element_type=jnp.float32)

    # CE(target=argmax) = log(sum_c exp(xp - max)); log only on the loss lanes.
    ocol = jax.lax.broadcasted_iota(jnp.int32, (1, r.shape[-1]), 1)
    is_loss = (ocol >= out_dims) & (ocol < out_dims + G)
    out_ref[...] = jnp.where(is_loss, jnp.log(r), r)


def init_codebook_params(key, in_dims, out_dims, num_codes, num_codebooks):
    """Synthetic parameters matching the nn.Module shapes / init."""
    k1, k2, k3 = jax.random.split(key, 3)
    codebook = jax.random.normal(k1, (num_codes, num_codebooks, out_dims),
                                 jnp.float32) / math.sqrt(out_dims * num_codebooks)
    # nn.Linear stores (out, in); we keep the transposed (in, out) layout.
    proj_w = jax.random.normal(k2, (in_dims, num_codebooks * num_codes),
                               jnp.float32) / math.sqrt(in_dims)
    proj_b = jnp.zeros((num_codebooks * num_codes,), jnp.float32)
    bound = 1.0 / math.sqrt(in_dims)   # weight_proj keeps nn.Linear default init
    wproj_w = jax.random.uniform(k3, (in_dims, num_codebooks), jnp.float32,
                                 -bound, bound)
    return dict(codebook=codebook, proj_w=proj_w, proj_b=proj_b, wproj_w=wproj_w)


def prepare_codebook_params(params):
    """Host-side, once-per-model packing of weights into the kernel layout."""
    codebook = params["codebook"]                         # (C, G, out)
    C, G, out_dims = codebook.shape
    GC = G * C
    GCp = _round_up(GC, 128)                  # code logits end on a lane boundary
    OUTP = _round_up(out_dims + G, 128)       # lane-dense packed output width
    in_dims = params["proj_w"].shape[0]

    # Fused [proj | weight_proj] weight (bf16 for the MXU) + f32 bias; the proj
    # block is zero-padded to GCp columns so the xp / wl split is lane-aligned.
    w_fused = jnp.zeros((in_dims, GCp + G), jnp.float32)
    w_fused = w_fused.at[:, :GC].set(params["proj_w"])
    w_fused = w_fused.at[:, GCp:].set(params["wproj_w"])
    w_fused = w_fused.astype(jnp.bfloat16)
    b_fused = jnp.zeros((1, GCp + G), jnp.float32).at[0, :GC].set(params["proj_b"])

    # Codebook rows -> output cols [0, out_dims):
    #   cb_flat[g*C + c] = codebook[c, g, :]   (matches unflatten(-1, (G, C)))
    cb_flat = jnp.transpose(codebook, (1, 0, 2)).reshape(GC, out_dims)
    cbp = jnp.zeros((GCp, OUTP), jnp.float32)
    cbp = cbp.at[:GC, :out_dims].set(cb_flat).astype(jnp.bfloat16)

    # Group-indicator rows -> output cols [out_dims, out_dims+G):
    #   segp[g*C + c, out_dims + g] = 1   (per-group sum of exp for the CE loss)
    grp = jnp.arange(GC) // C
    seg = (grp[:, None] == jnp.arange(G)[None, :]).astype(jnp.float32)
    segp = jnp.zeros((GCp, OUTP), jnp.float32)
    segp = segp.at[:GC, out_dims:out_dims + G].set(seg)

    return dict(w_fused=w_fused, b_fused=b_fused, cbp=cbp, segp=segp,
                num_codes=C, num_codebooks=G, out_dims=out_dims,
                gc_pad=GCp, out_pad=OUTP)


def codebook_forward(x, prep, *, tile_m=None):
    """Pallas equivalent of Codebook.forward(x, target=None) -> (emb, loss)."""
    # TODO(synk): explicit `target` argument path not implemented (target=None only).
    G, C = prep["num_codebooks"], prep["num_codes"]
    GCp, OUTP, out_dims = prep["gc_pad"], prep["out_pad"], prep["out_dims"]
    in_dims = x.shape[-1]
    lead = x.shape[:-1]

    xf = x.reshape(-1, in_dims)           # no host-side dtype cast / pad copies
    N = xf.shape[0]

    # --- generation-aware tile & VMEM budget --------------------------------
    try:
        vmem_cap = int(getattr(pltpu.get_tpu_info(), "vmem_capacity_bytes", 0)) or (64 << 20)
    except Exception:
        vmem_cap = 64 << 20
    vmem_cap = max(vmem_cap, 48 << 20)
    try:
        kind = jax.devices()[0].device_kind.lower()
    except Exception:
        kind = ""

    resident = (prep["w_fused"].size * 2 + prep["b_fused"].size * 4
                + prep["cbp"].size * 2 + prep["segp"].size * 4)

    def tile_bytes(tm):
        x_stream = 2 * tm * in_dims * xf.dtype.itemsize          # double-buffered x
        out_stream = 2 * tm * OUTP * 4                           # double-buffered out
        interm = tm * (GCp + G) * 4 + 7 * tm * GCp * 4           # y, xp, m, xw_full, w1h, p, ...
        return x_stream + out_stream + interm

    if tile_m is None:
        # v5e: spill-sensitive (1 vst slot) -> smaller tile; v6e: 128 MiB VMEM
        # -> bigger tile; v7x / default: 64 MiB VMEM.
        tm = 256 if "v5" in kind else (1024 if "v6" in kind else 512)
    else:
        tm = tile_m
    tm = _round_up(max(16, min(tm, _round_up(N, 16))), 16)
    budget = max(int(0.55 * vmem_cap) - resident, 2 << 20)
    while tm > 16 and tile_bytes(tm) > budget:
        tm = _round_up(max(16, tm // 2), 16)
    if tile_m is None and N >= 64:
        # Keep >= 4 grid steps so the pipeline has depth and both v7x
        # TensorCores get balanced work.
        tm = min(tm, _round_up(pl.cdiv(N, 4), 16))
    grid = (pl.cdiv(N, tm),)              # ragged last tile: OOB writes are masked

    vmem_limit = int(min(max(2 * resident + tile_bytes(tm) + (8 << 20), 32 << 20),
                         int(0.8 * vmem_cap)))

    kernel = functools.partial(_codebook_kernel, num_codebooks=G, num_codes=C,
                               gc_pad=GCp, out_dims=out_dims)
    r = pl.pallas_call(
        kernel,
        out_shape=jax.ShapeDtypeStruct((N, OUTP), jnp.float32),
        grid_spec=pltpu.PrefetchScalarGridSpec(
            num_scalar_prefetch=0,
            grid=grid,
            in_specs=[
                pl.BlockSpec((tm, in_dims), lambda i: (i, 0)),        # x tile (streamed)
                pl.BlockSpec((in_dims, GCp + G), lambda i: (0, 0)),   # fused weights (resident)
                pl.BlockSpec((1, GCp + G), lambda i: (0, 0)),         # fused bias (resident)
                pl.BlockSpec((GCp, OUTP), lambda i: (0, 0)),          # codebook rows (resident, bf16)
                pl.BlockSpec((GCp, OUTP), lambda i: (0, 0)),          # group indicator (resident, f32)
            ],
            out_specs=pl.BlockSpec((tm, OUTP), lambda i: (i, 0)),     # lane-dense packed output
        ),
        compiler_params=pltpu.CompilerParams(
            dimension_semantics=("parallel",),
            vmem_limit_bytes=vmem_limit,
        ),
    )(xf, prep["w_fused"], prep["b_fused"], prep["cbp"], prep["segp"])

    emb = r[:, :out_dims].reshape(*lead, out_dims)
    loss = r[:, out_dims:out_dims + G].reshape(*lead, G)
    return emb, loss


def codebook_reference(x, params):
    """Pure-JAX reference with the same bf16 weight/input rounding as the kernel."""
    cb = params["codebook"]
    C, G, out_dims = cb.shape
    xb = x.astype(jnp.bfloat16).astype(jnp.float32)
    pw = params["proj_w"].astype(jnp.bfloat16).astype(jnp.float32)
    ww = params["wproj_w"].astype(jnp.bfloat16).astype(jnp.float32)
    xp = (xb @ pw + params["proj_b"]).reshape(*x.shape[:-1], G, C)
    xw = jax.nn.softmax(xb @ ww, axis=-1)
    target = jnp.argmax(xp, axis=-1)                       # (*, G)
    gathered = cb[target, jnp.arange(G)]                   # (*, G, out)
    emb = (gathered * xw[..., None]).sum(-2)
    loss = jax.nn.logsumexp(xp, axis=-1) - jnp.max(xp, axis=-1)
    return emb, loss


if __name__ == "__main__":
    # Small shapes consistent with the module: x has shape (*, in_dims).
    B, T = 2, 8
    in_dims, out_dims = 32, 16
    num_codes, num_codebooks = 32, 4

    key = jax.random.PRNGKey(0)
    kp, kx = jax.random.split(key)
    params = init_codebook_params(kp, in_dims, out_dims, num_codes, num_codebooks)
    prep = prepare_codebook_params(params)          # once, at parameter-load time
    x = jax.random.normal(kx, (B, T, in_dims), jnp.float32)

    emb, loss = codebook_forward(x, prep)
    jax.block_until_ready((emb, loss))

    assert emb.shape == (B, T, out_dims)
    assert loss.shape == (B, T, num_codebooks)
    assert bool(jnp.isfinite(emb).all()) and bool(jnp.isfinite(loss).all())

    emb_ref, loss_ref = codebook_reference(x, params)
    assert bool(jnp.allclose(loss, loss_ref, atol=1e-2)), \
        float(jnp.max(jnp.abs(loss - loss_ref)))
    assert bool(jnp.allclose(emb, emb_ref, atol=3e-2)), \
        float(jnp.max(jnp.abs(emb - emb_ref)))
    print("KERNEL_OK")
</pallas_src>

<mosaic_0001>
module attributes {stable_mosaic.version = 11 : i64} {
  func.func @_codebook_kernel(%arg0: i32, %arg1: memref<16x32xf32, #tpu.memory_space<vmem>>, %arg2: memref<32x132xbf16, #tpu.memory_space<vmem>>, %arg3: memref<1x132xf32, #tpu.memory_space<vmem>>, %arg4: memref<128x128xbf16, #tpu.memory_space<vmem>>, %arg5: memref<128x128xf32, #tpu.memory_space<vmem>>, %arg6: memref<16x128xf32, #tpu.memory_space<vmem>>) attributes {dimension_semantics = [#tpu.dimension_semantics<parallel>], iteration_bounds = array<i64: 1>, scalar_prefetch = 0 : i64, scratch_operands = 0 : i64, tpu.core_type = #tpu.core_type<tc>, window_params = [{transform_indices = @transform_0, window_bounds = array<i64: 16, 32>}, {pipeline_mode = #tpu.pipeline_mode<synchronous>, transform_indices = @transform_1, window_bounds = array<i64: 32, 132>}, {pipeline_mode = #tpu.pipeline_mode<synchronous>, transform_indices = @transform_2, window_bounds = array<i64: 1, 132>}, {pipeline_mode = #tpu.pipeline_mode<synchronous>, transform_indices = @transform_3, window_bounds = array<i64: 128, 128>}, {pipeline_mode = #tpu.pipeline_mode<synchronous>, transform_indices = @transform_4, window_bounds = array<i64: 128, 128>}, {transform_indices = @transform_5, window_bounds = array<i64: 16, 128>}]} {
    %c0 = arith.constant 0 : index
    %c0_0 = arith.constant 0 : index
    %0 = vector.load %arg1[%c0, %c0_0] : memref<16x32xf32, #tpu.memory_space<vmem>>, vector<16x32xf32>
    %1 = arith.truncf %0 : vector<16x32xf32> to vector<16x32xbf16>
    %c0_1 = arith.constant 0 : index
    %c0_2 = arith.constant 0 : index
    %2 = vector.load %arg2[%c0_1, %c0_2] : memref<32x132xbf16, #tpu.memory_space<vmem>>, vector<32x132xbf16>
    %cst = arith.constant dense<0.000000e+00> : vector<16x132xf32>
    %3 = tpu.matmul %1, %2, %cst {dimension_numbers = #tpu.dot_dimension_numbers<[1], [0], [0], [1], [0, 0, 1, 1], [], []>} : vector<16x32xbf16>, vector<32x132xbf16>, vector<16x132xf32> -> vector<16x132xf32>
    %c0_3 = arith.constant 0 : index
    %c0_4 = arith.constant 0 : index
    %4 = vector.load %arg3[%c0_3, %c0_4] : memref<1x132xf32, #tpu.memory_space<vmem>>, vector<1x132xf32>
    %5 = vector.broadcast %4 : vector<1x132xf32> to vector<16x132xf32>
    %6 = arith.addf %3, %5 : vector<16x132xf32>
    %7 = vector.extract_strided_slice %6 {offsets = [0, 0], sizes = [16, 128], strides = [1, 1]} : vector<16x132xf32> to vector<16x128xf32>
    %8 = vector.extract_strided_slice %6 {offsets = [0, 128], sizes = [16, 4], strides = [1, 1]} : vector<16x132xf32> to vector<16x4xf32>
    %cst_5 = arith.constant dense<0xFF800000> : vector<16xf32>
    %9 = vector.multi_reduction <maximumf>, %8, %cst_5 [1] : vector<16x4xf32> to vector<16xf32>
    %10 = vector.shape_cast %9 : vector<16xf32> to vector<16x1xf32>
    %11 = vector.broadcast %10 : vector<16x1xf32> to vector<16x4xf32>
    %12 = arith.subf %8, %11 : vector<16x4xf32>
    %13 = math.exp %12 : vector<16x4xf32>
    %cst_6 = arith.constant dense<0.000000e+00> : vector<16xf32>
    %14 = vector.multi_reduction <add>, %13, %cst_6 [1] : vector<16x4xf32> to vector<16xf32>
    %15 = vector.shape_cast %14 : vector<16xf32> to vector<16x1xf32>
    %16 = vector.broadcast %15 : vector<16x1xf32> to vector<16x4xf32>
    %17 = arith.divf %13, %16 : vector<16x4xf32>
    %18 = tpu.iota {dimensions = array<i32: 1>} : vector<1x128xi32>
    %cst_7 = arith.constant 0.000000e+00 : f32
    %19 = vector.broadcast %cst_7 : f32 to vector<16x128xf32>
    %cst_8 = arith.constant 0.000000e+00 : f32
    %20 = vector.broadcast %cst_8 : f32 to vector<16x128xf32>
    %c0_i32 = arith.constant 0 : i32
    %21 = vector.broadcast %c0_i32 : i32 to vector<1x128xi32>
    %22 = arith.cmpi sge, %18, %21 : vector<1x128xi32>
    %c32_i32 = arith.constant 32 : i32
    %23 = vector.broadcast %c32_i32 : i32 to vector<1x128xi32>
    %24 = arith.cmpi slt, %18, %23 : vector<1x128xi32>
    %25 = arith.andi %22, %24 : vector<1x128xi1>
    %cst_9 = arith.constant 0xFF800000 : f32
    %26 = vector.shape_cast %25 : vector<1x128xi1> to vector<1x128xi1>
    %27 = vector.broadcast %26 : vector<1x128xi1> to vector<16x128xi1>
    %28 = vector.broadcast %cst_9 : f32 to vector<16x128xf32>
    %29 = arith.select %27, %7, %28 : vector<16x128xi1>, vector<16x128xf32>
    %cst_10 = arith.constant dense<0xFF800000> : vector<16xf32>
    %30 = vector.multi_reduction <maximumf>, %29, %cst_10 [1] : vector<16x128xf32> to vector<16xf32>
    %31 = vector.shape_cast %30 : vector<16xf32> to vector<16x1xf32>
    %32 = vector.shape_cast %25 : vector<1x128xi1> to vector<1x128xi1>
    %33 = vector.broadcast %32 : vector<1x128xi1> to vector<16x128xi1>
    %34 = vector.shape_cast %31 : vector<16x1xf32> to vector<16x1xf32>
    %35 = vector.broadcast %34 : vector<16x1xf32> to vector<16x128xf32>
    %36 = arith.select %33, %35, %19 : vector<16x128xi1>, vector<16x128xf32>
    %37 = vector.extract_strided_slice %17 {offsets = [0, 0], sizes = [16, 1], strides = [1, 1]} : vector<16x4xf32> to vector<16x1xf32>
    %38 = vector.shape_cast %25 : vector<1x128xi1> to vector<1x128xi1>
    %39 = vector.broadcast %38 : vector<1x128xi1> to vector<16x128xi1>
    %40 = vector.shape_cast %37 : vector<16x1xf32> to vector<16x1xf32>
    %41 = vector.broadcast %40 : vector<16x1xf32> to vector<16x128xf32>
    %42 = arith.select %39, %41, %20 : vector<16x128xi1>, vector<16x128xf32>
    %c32_i32_11 = arith.constant 32 : i32
    %43 = vector.broadcast %c32_i32_11 : i32 to vector<1x128xi32>
    %44 = arith.cmpi sge, %18, %43 : vector<1x128xi32>
    %c64_i32 = arith.constant 64 : i32
    %45 = vector.broadcast %c64_i32 : i32 to vector<1x128xi32>
    %46 = arith.cmpi slt, %18, %45 : vector<1x128xi32>
    %47 = arith.andi %44, %46 : vector<1x128xi1>
    %cst_12 = arith.constant 0xFF800000 : f32
    %48 = vector.shape_cast %47 : vector<1x128xi1> to vector<1x128xi1>
    %49 = vector.broadcast %48 : vector<1x128xi1> to vector<16x128xi1>
    %50 = vector.broadcast %cst_12 : f32 to vector<16x128xf32>
    %51 = arith.select %49, %7, %50 : vector<16x128xi1>, vector<16x128xf32>
    %cst_13 = arith.constant dense<0xFF800000> : vector<16xf32>
    %52 = vector.multi_reduction <maximumf>, %51, %cst_13 [1] : vector<16x128xf32> to vector<16xf32>
    %53 = vector.shape_cast %52 : vector<16xf32> to vector<16x1xf32>
    %54 = vector.shape_cast %47 : vector<1x128xi1> to vector<1x128xi1>
    %55 = vector.broadcast %54 : vector<1x128xi1> to vector<16x128xi1>
    %56 = vector.shape_cast %53 : vector<16x1xf32> to vector<16x1xf32>
    %57 = vector.broadcast %56 : vector<16x1xf32> to vector<16x128xf32>
    %58 = arith.select %55, %57, %36 : vector<16x128xi1>, vector<16x128xf32>
    %59 = vector.extract_strided_slice %17 {offsets = [0, 1], sizes = [16, 1], strides = [1, 1]} : vector<16x4xf32> to vector<16x1xf32>
    %60 = vector.shape_cast %47 : vector<1x128xi1> to vector<1x128xi1>
    %61 = vector.broadcast %60 : vector<1x128xi1> to vector<16x128xi1>
    %62 = vector.shape_cast %59 : vector<16x1xf32> to vector<16x1xf32>
    %63 = vector.broadcast %62 : vector<16x1xf32> to vector<16x128xf32>
    %64 = arith.select %61, %63, %42 : vector<16x128xi1>, vector<16x128xf32>
    %c64_i32_14 = arith.constant 64 : i32
    %65 = vector.broadcast %c64_i32_14 : i32 to vector<1x128xi32>
    %66 = arith.cmpi sge, %18, %65 : vector<1x128xi32>
    %c96_i32 = arith.constant 96 : i32
    %67 = vector.broadcast %c96_i32 : i32 to vector<1x128xi32>
    %68 = arith.cmpi slt, %18, %67 : vector<1x128xi32>
    %69 = arith.andi %66, %68 : vector<1x128xi1>
    %cst_15 = arith.constant 0xFF800000 : f32
    %70 = vector.shape_cast %69 : vector<1x128xi1> to vector<1x128xi1>
    %71 = vector.broadcast %70 : vector<1x128xi1> to vector<16x128xi1>
    %72 = vector.broadcast %cst_15 : f32 to vector<16x128xf32>
    %73 = arith.select %71, %7, %72 : vector<16x128xi1>, vector<16x128xf32>
    %cst_16 = arith.constant dense<0xFF800000> : vector<16xf32>
    %74 = vector.multi_reduction <maximumf>, %73, %cst_16 [1] : vector<16x128xf32> to vector<16xf32>
    %75 = vector.shape_cast %74 : vector<16xf32> to vector<16x1xf32>
    %76 = vector.shape_cast %69 : vector<1x128xi1> to vector<1x128xi1>
    %77 = vector.broadcast %76 : vector<1x128xi1> to vector<16x128xi1>
    %78 = vector.shape_cast %75 : vector<16x1xf32> to vector<16x1xf32>
    %79 = vector.broadcast %78 : vector<16x1xf32> to vector<16x128xf32>
    %80 = arith.select %77, %79, %58 : vector<16x128xi1>, vector<16x128xf32>
    %81 = vector.extract_strided_slice %17 {offsets = [0, 2], sizes = [16, 1], strides = [1, 1]} : vector<16x4xf32> to vector<16x1xf32>
    %82 = vector.shape_cast %69 : vector<1x128xi1> to vector<1x128xi1>
    %83 = vector.broadcast %82 : vector<1x128xi1> to vector<16x128xi1>
    %84 = vector.shape_cast %81 : vector<16x1xf32> to vector<16x1xf32>
    %85 = vector.broadcast %84 : vector<16x1xf32> to vector<16x128xf32>
    %86 = arith.select %83, %85, %64 : vector<16x128xi1>, vector<16x128xf32>
    %c96_i32_17 = arith.constant 96 : i32
    %87 = vector.broadcast %c96_i32_17 : i32 to vector<1x128xi32>
    %88 = arith.cmpi sge, %18, %87 : vector<1x128xi32>
    %c128_i32 = arith.constant 128 : i32
    %89 = vector.broadcast %c128_i32 : i32 to vector<1x128xi32>
    %90 = arith.cmpi slt, %18, %89 : vector<1x128xi32>
    %91 = arith.andi %88, %90 : vector<1x128xi1>
    %cst_18 = arith.constant 0xFF800000 : f32
    %92 = vector.shape_cast %91 : vector<1x128xi1> to vector<1x128xi1>
    %93 = vector.broadcast %92 : vector<1x128xi1> to vector<16x128xi1>
    %94 = vector.broadcast %cst_18 : f32 to vector<16x128xf32>
    %95 = arith.select %93, %7, %94 : vector<16x128xi1>, vector<16x128xf32>
    %cst_19 = arith.constant dense<0xFF800000> : vector<16xf32>
    %96 = vector.multi_reduction <maximumf>, %95, %cst_19 [1] : vector<16x128xf32> to vector<16xf32>
    %97 = vector.shape_cast %96 : vector<16xf32> to vector<16x1xf32>
    %98 = vector.shape_cast %91 : vector<1x128xi1> to vector<1x128xi1>
    %99 = vector.broadcast %98 : vector<1x128xi1> to vector<16x128xi1>
    %100 = vector.shape_cast %97 : vector<16x1xf32> to vector<16x1xf32>
    %101 = vector.broadcast %100 : vector<16x1xf32> to vector<16x128xf32>
    %102 = arith.select %99, %101, %80 : vector<16x128xi1>, vector<16x128xf32>
    %103 = vector.extract_strided_slice %17 {offsets = [0, 3], sizes = [16, 1], strides = [1, 1]} : vector<16x4xf32> to vector<16x1xf32>
    %104 = vector.shape_cast %91 : vector<1x128xi1> to vector<1x128xi1>
    %105 = vector.broadcast %104 : vector<1x128xi1> to vector<16x128xi1>
    %106 = vector.shape_cast %103 : vector<16x1xf32> to vector<16x1xf32>
    %107 = vector.broadcast %106 : vector<16x1xf32> to vector<16x128xf32>
    %108 = arith.select %105, %107, %86 : vector<16x128xi1>, vector<16x128xf32>
    %109 = arith.cmpf oge, %7, %102 : vector<16x128xf32>
    %cst_20 = arith.constant 0.000000e+00 : f32
    %110 = vector.broadcast %cst_20 : f32 to vector<16x128xf32>
    %111 = arith.select %109, %108, %110 : vector<16x128xi1>, vector<16x128xf32>
    %112 = arith.subf %7, %102 : vector<16x128xf32>
    %113 = math.exp %112 : vector<16x128xf32>
    %114 = arith.truncf %111 : vector<16x128xf32> to vector<16x128xbf16>
    %c0_21 = arith.constant 0 : index
    %c0_22 = arith.constant 0 : index
    %115 = vector.load %arg4[%c0_21, %c0_22] : memref<128x128xbf16, #tpu.memory_space<vmem>>, vector<128x128xbf16>
    %cst_23 = arith.constant dense<0.000000e+00> : vector<16x128xf32>
    %116 = tpu.matmul %114, %115, %cst_23 {dimension_numbers = #tpu.dot_dimension_numbers<[1], [0], [0], [1], [0, 0, 1, 1], [], []>} : vector<16x128xbf16>, vector<128x128xbf16>, vector<16x128xf32> -> vector<16x128xf32>
    %c0_24 = arith.constant 0 : index
    %c0_25 = arith.constant 0 : index
    %117 = vector.load %arg5[%c0_24, %c0_25] : memref<128x128xf32, #tpu.memory_space<vmem>>, vector<128x128xf32>
    %cst_26 = arith.constant dense<0.000000e+00> : vector<16x128xf32>
    %118 = tpu.matmul %113, %117, %cst_26 {dimension_numbers = #tpu.dot_dimension_numbers<[1], [0], [0], [1], [0, 0, 1, 1], [], []>} : vector<16x128xf32>, vector<128x128xf32>, vector<16x128xf32> -> vector<16x128xf32>
    %119 = arith.addf %116, %118 : vector<16x128xf32>
    %120 = tpu.iota {dimensions = array<i32: 1>} : vector<1x128xi32>
    %c16_i32 = arith.constant 16 : i32
    %121 = vector.broadcast %c16_i32 : i32 to vector<1x128xi32>
    %122 = arith.cmpi sge, %120, %121 : vector<1x128xi32>
    %c20_i32 = arith.constant 20 : i32
    %123 = vector.broadcast %c20_i32 : i32 to vector<1x128xi32>
    %124 = arith.cmpi slt, %120, %123 : vector<1x128xi32>
    %125 = arith.andi %122, %124 : vector<1x128xi1>
    %126 = math.log %119 : vector<16x128xf32>
    %127 = vector.shape_cast %125 : vector<1x128xi1> to vector<1x128xi1>
    %128 = vector.broadcast %127 : vector<1x128xi1> to vector<16x128xi1>
    %129 = arith.select %128, %126, %119 : vector<16x128xi1>, vector<16x128xf32>
    %c0_27 = arith.constant 0 : index
    %c0_28 = arith.constant 0 : index
    %130 = vector.load %arg6[%c0_27, %c0_28] : memref<16x128xf32, #tpu.memory_space<vmem>>, vector<16x128xf32>
    tpu.vector_store %arg6[%c0_27, %c0_28], %129 {strides = array<i32>} : memref<16x128xf32, #tpu.memory_space<vmem>>, vector<16x128xf32>,
    return
  }
  func.func @transform_0(%arg0: i32) -> (i32, i32) {
    %c0_i32 = arith.constant 0 : i32
    %c0_i32_0 = arith.constant 0 : i32
    return %arg0, %c0_i32 : i32, i32
  }
  func.func @transform_1(%arg0: i32) -> (i32, i32) {
    %c0_i32 = arith.constant 0 : i32
    %c0_i32_0 = arith.constant 0 : i32
    %c0_i32_1 = arith.constant 0 : i32
    return %c0_i32, %c0_i32_0 : i32, i32
  }
  func.func @transform_2(%arg0: i32) -> (i32, i32) {
    %c0_i32 = arith.constant 0 : i32
    %c0_i32_0 = arith.constant 0 : i32
    %c0_i32_1 = arith.constant 0 : i32
    return %c0_i32, %c0_i32_0 : i32, i32
  }
  func.func @transform_3(%arg0: i32) -> (i32, i32) {
    %c0_i32 = arith.constant 0 : i32
    %c0_i32_0 = arith.constant 0 : i32
    %c0_i32_1 = arith.constant 0 : i32
    return %c0_i32, %c0_i32_0 : i32, i32
  }
  func.func @transform_4(%arg0: i32) -> (i32, i32) {
    %c0_i32 = arith.constant 0 : i32
    %c0_i32_0 = arith.constant 0 : i32
    %c0_i32_1 = arith.constant 0 : i32
    return %c0_i32, %c0_i32_0 : i32, i32
  }
  func.func @transform_5(%arg0: i32) -> (i32, i32) {
    %c0_i32 = arith.constant 0 : i32
    %c0_i32_0 = arith.constant 0 : i32
    return %arg0, %c0_i32 : i32, i32
  }
}

</mosaic_0001>

<llo_original>
// kernel: tpu_custom_call.1
$region0: #{tpu_custom_call.1}
  #allocation0 [shape = 'u32[]', space=smem, size = 0x4, offset = 0x4, fixed_abs, tag = 'smem constant byte address 0x4 - core index']
  #allocation1 [shape = 'u32[144,128]{1,0:T(1,128)}', space=vmem, size = 0x12000, scoped, tag = 'internal scratch']
  %s0 = inlined_call_operand.hbm [shape: f32[16,32], index: 0, kind: input, shape index: {}]
  %s1 = inlined_call_operand.hbm [shape: bf16[32,132], index: 1, kind: input, shape index: {}]
  %s2 = inlined_call_operand.vmem [shape: f32[1,132], index: 2, kind: input, shape index: {}]
  %s3 = inlined_call_operand.hbm [shape: bf16[128,128], index: 3, kind: input, shape index: {}]
  %s4 = inlined_call_operand.hbm [shape: f32[128,128], index: 4, kind: input, shape index: {}]
  %s5 = inlined_call_operand.hbm [shape: f32[16,128], index: 5, kind: output, shape index: {}]
  %s6 = sld [smem:[#allocation0]]
  $region46: #{tpu_custom_call.1} parent=0
    _
  %s8 = ssub.s32 1, %s6
  %s9 = scalar_select 0, %s8, %s6
  $region1: #{tpu_custom_call.1} parent=0
    #allocation2 [shape = 'u8[8192]{0}', space=vmem, size = 0x2000, scoped, tag = 'input window, operand 0, single buffered']
    #allocation3 [shape = 's32[1]{0}', space=sflag, size = 0x4, scoped, tag = 'scoped memory for tpu_custom_call.1']
    #allocation4 [shape = 's32[1]{0}', space=sflag, size = 0x4, scoped, tag = 'scoped memory for tpu_custom_call.1']
    #allocation5 [shape = 'u8[16384]{0}', space=vmem, size = 0x4000, scoped, tag = 'input window, operand 1, single buffered']
    #allocation6 [shape = 's32[1]{0}', space=sflag, size = 0x4, scoped, tag = 'scoped memory for tpu_custom_call.1']
    #allocation7 [shape = 'u8[32768]{0}', space=vmem, size = 0x8000, scoped, tag = 'input window, operand 3, single buffered']
    #allocation8 [shape = 'u8[65536]{0}', space=vmem, size = 0x10000, scoped, tag = 'input window, operand 4, single buffered']
    #allocation9 [shape = 's32[1]{0}', space=sflag, size = 0x4, scoped, tag = 'scoped memory for tpu_custom_call.1']
    #allocation10 [shape = 'u8[8192]{0}', space=vmem, size = 0x2000, scoped, tag = 'output window, operand 0, single buffered']
    %10 = vsyncpa [#allocation3], 0
    %11 = vsyncpa [#allocation6], 0
    %12 = vsyncpa [#allocation9], 0
    %13 = vsyncpa [#allocation4], 0
    // Predicated region
    $region2: #{tpu_custom_call.1} parent=1 // pred_check
      _
    $region3: #{tpu_custom_call.1} parent=1 // pred_check_branch
      %15 = sbr.rel (0) target = $region5
    $region4: #{tpu_custom_call.1} parent=1 // pred_region
      %s17 = ssub.s32 256, 256
      %18 = vsyncadd [#allocation3], %s17
      %s19 = sshll.u32 [#allocation2], 4
      %s20 = int_to_ptr.vmem [resolvable:$true] %s19
      %25 = dma.hbm_to_vmem [thread:$0]  %s0, 256, %s20, [#allocation3], 128, 128, 8
    $region5: #{tpu_custom_call.1} parent=1 // pred_fallthru
      _
    // Predicated region
    $region6: #{tpu_custom_call.1} parent=1 // pred_check
      _
    $region7: #{tpu_custom_call.1} parent=1 // pred_check_branch
      %27 = sbr.rel (0) target = $region9
    $region8: #{tpu_custom_call.1} parent=1 // pred_region
      %s29 = ssub.s32 512, 512
      %30 = vsyncadd [#allocation6], %s29
      %s31 = sshll.u32 [#allocation5], 4
      %s32 = int_to_ptr.vmem [resolvable:$true] %s31
      %37 = dma.hbm_to_vmem [thread:$0]  %s1, 512, %s32, [#allocation6], 128, 128, 8
    $region9: #{tpu_custom_call.1} parent=1 // pred_fallthru
      _
    // Predicated region
    $region10: #{tpu_custom_call.1} parent=1 // pred_check
      _
    $region11: #{tpu_custom_call.1} parent=1 // pred_check_branch
      %39 = sbr.rel (0) target = $region13
    $region12: #{tpu_custom_call.1} parent=1 // pred_region
      _
    $region13: #{tpu_custom_call.1} parent=1 // pred_fallthru
      _
    // Predicated region
    $region14: #{tpu_custom_call.1} parent=1 // pred_check
      _
    $region15: #{tpu_custom_call.1} parent=1 // pred_check_branch
      %41 = sbr.rel (0) target = $region17
    $region16: #{tpu_custom_call.1} parent=1 // pred_region
      %s43 = ssub.s32 1024, 1024
      %44 = vsyncadd [#allocation6], %s43
      %s45 = sshll.u32 [#allocation7], 4
      %s46 = int_to_ptr.vmem [resolvable:$true] %s45
      %51 = dma.hbm_to_vmem [thread:$0]  %s3, 1024, %s46, [#allocation6], 64, 64, 4
    $region17: #{tpu_custom_call.1} parent=1 // pred_fallthru
      _
    // Predicated region
    $region18: #{tpu_custom_call.1} parent=1 // pred_check
      _
    $region19: #{tpu_custom_call.1} parent=1 // pred_check_branch
      %53 = sbr.rel (0) target = $region21
    $region20: #{tpu_custom_call.1} parent=1 // pred_region
      %s55 = ssub.s32 2048, 2048
      %56 = vsyncadd [#allocation9], %s55
      %s57 = sshll.u32 [#allocation8], 4
      %s58 = int_to_ptr.vmem [resolvable:$true] %s57
      %63 = dma.hbm_to_vmem [thread:$0]  %s4, 2048, %s58, [#allocation9], 128, 128, 8
    $region21: #{tpu_custom_call.1} parent=1 // pred_fallthru
      _
    // Predicated region
    $region22: #{tpu_custom_call.1} parent=1 // pred_check
      _
    $region23: #{tpu_custom_call.1} parent=1 // pred_check_branch
      %65 = sbr.rel (0) target = $region25
    $region24: #{tpu_custom_call.1} parent=1 // pred_region
      %66 = dma.done [#allocation3], 256
    $region25: #{tpu_custom_call.1} parent=1 // pred_fallthru
      _
    // Predicated region
    $region26: #{tpu_custom_call.1} parent=1 // pred_check
      _
    $region27: #{tpu_custom_call.1} parent=1 // pred_check_branch
      %68 = sbr.rel (0) target = $region29
    $region28: #{tpu_custom_call.1} parent=1 // pred_region
      %69 = dma.done [#allocation6], 512
    $region29: #{tpu_custom_call.1} parent=1 // pred_fallthru
      _
    // Predicated region
    $region30: #{tpu_custom_call.1} parent=1 // pred_check
      _
    $region31: #{tpu_custom_call.1} parent=1 // pred_check_branch
      %71 = sbr.rel (0) target = $region33
    $region32: #{tpu_custom_call.1} parent=1 // pred_region
      %72 = dma.done [#allocation6], 1024
    $region33: #{tpu_custom_call.1} parent=1 // pred_fallthru
      _
    // Predicated region
    $region34: #{tpu_custom_call.1} parent=1 // pred_check
      _
    $region35: #{tpu_custom_call.1} parent=1 // pred_check_branch
      %74 = sbr.rel (0) target = $region37
    $region36: #{tpu_custom_call.1} parent=1 // pred_region
      %75 = dma.done [#allocation9], 2048
    $region37: #{tpu_custom_call.1} parent=1 // pred_fallthru
      _
    %v77 = vld [vmem:[#allocation2] sm:$0xff]
    %v78 = vld [vmem:[#allocation2 + $0x8] sm:$0xff]
    %v79 = vpack.c.bf16 %v78, %v77
    %v80 = vld [vmem:[#allocation5] sm:$0xff]
    %v81 = vld [vmem:[#allocation5 + $0x8] sm:$0xff]
    %v82 = vld [vmem:[#allocation5 + $0x10] sm:$0xff]
    %v83 = vld [vmem:[#allocation5 + $0x18] sm:$0xff]
    %v84 = vld [vmem:[%s2] sm:$0x3]
    %v86 = vlaneseq
    %v87 = vshrl.u32 %v86, 7
    %v88 = vsub.s32 0, %v87
    %v89 = vrot.slane %v84, %v88
    %v90 = vlaneseq
    %v91 = vshrl.u32 %v90, 7
    %v92 = vsub.s32 1, %v91
    %v93 = vrot.slane %v84, %v92
    %v100 = vunpack.c.l.b16 %v80
    %v101 = vunpack.c.h.b16 %v80
    %v102 = vunpack.c.l.b16 %v81
    %v103 = vunpack.c.h.b16 %v81
    %v104 = vunpack.c.l.b16 %v82
    %v105 = vunpack.c.h.b16 %v82
    %v106 = vunpack.c.l.b16 %v83
    %v107 = vunpack.c.h.b16 %v83
    %v108 = vpack.c.b16 %v102, %v100
    %v109 = vpack.c.b16 %v103, %v101
    %v110 = vpack.c.b16 %v106, %v104
    %v111 = vpack.c.b16 %v107, %v105
    %vm116 = vcmask 261120
    %v118 = vsel %vm116, %v79, 0
    %120 = vmatprep.subr.bf16.mxu0 %v109
    %121 = vmatpush1.bf16.msra.mxu0 %v108
    %122 = vmatprep.subr.bf16.mxu0 %v111
    %123 = vmatpush1.bf16.msra.mxu0 %v110
    %124 = vmatprep.subr.bf16.mxu0 0
    %125 = vmatpush1.bf16.msra.mxu0 0
    %126 = vmatprep.subr.bf16.mxu0 0
    %127 = vmatpush1.bf16.msra.mxu0 0
    %128 = vmatprep.subr.bf16.mxu0 0
    %129 = vmatpush1.bf16.msra.mxu0 0
    %130 = vmatprep.subr.bf16.mxu0 0
    %131 = vmatpush1.bf16.msra.mxu0 0
    %132 = vmatprep.subr.bf16.mxu0 0
    %133 = vmatpush1.bf16.msra.mxu0 0
    %134 = vmatprep.subr.bf16.mxu0 0
    %135 = vmatpush1.bf16.msra.mxu0 0
    %136 = vmatprep.subr.bf16.mxu0 0
    %137 = vmatpush1.bf16.msra.mxu0 0
    %138 = vmatprep.subr.bf16.mxu0 0
    %139 = vmatpush1.bf16.msra.mxu0 0
    %140 = vmatprep.subr.bf16.mxu0 0
    %141 = vmatpush1.bf16.msra.mxu0 0
    %142 = vmatprep.subr.bf16.mxu0 0
    %143 = vmatpush1.bf16.msra.mxu0 0
    %144 = vmatprep.subr.bf16.mxu0 0
    %145 = vmatpush1.bf16.msra.mxu0 0
    %146 = vmatprep.subr.bf16.mxu0 0
    %147 = vmatpush1.bf16.msra.mxu0 0
    %148 = vmatprep.subr.bf16.mxu0 0
    %149 = vmatpush1.bf16.msra.mxu0 0
    %150 = vmatprep.subr.bf16.mxu0 0
    %151 = vmatpush1.bf16.msra.mxu0 0
    %152 = vmatprep.mubr.bf16.mxu0 0
    %153 = vmatmul.mubr.bf16.gmra.mrb[0].mxu0 %v118
    %v154 = vpop.f32.mrb[0].mxu0
    %v155 = vadd.f32 %v89, %v154
    %v156 = vpop.f32.mrb[0].mxu0
    %v157 = vadd.f32 %v93, %v156
    %v158 = vpop.f32.mrb[0].mxu0
    %v159 = vadd.f32 %v89, %v158
    %v160 = vpop.f32.mrb[0].mxu0
    %v161 = vadd.f32 %v93, %v160
    %162 = vdwg.mxu0
    %vm163 = vcmask 31744
    %v164 = vsel %vm163, %v157, -inf
    %165 = vmax.xlane.f32.xlu0 %v164
    %v166 = vpop.xlane.xlu0 %165
    %v167 = vsel %vm163, %v161, -inf
    %168 = vmax.xlane.f32.xlu0 %v167
    %v169 = vpop.xlane.xlu0 %168
    %v170 = vsub.f32 %v157, %v166
    %v171 = vsub.f32 %v161, %v169
    %v172 = vmul.f32 %v170, 1.442695
    %v173 = vpow.pop %v172
    %v174 = vmul.f32 %v171, 1.442695
    %v175 = vpow.pop %v174
    %v176 = vsel %vm163, %v173, 0.0
    %177 = vadd.xlane.f32.xlu0 %v176
    %v178 = vpop.xlane.xlu0 %177
    %v179 = vsel %vm163, %v175, 0.0
    %180 = vadd.xlane.f32.xlu0 %v179
    %v181 = vpop.xlane.xlu0 %180
    %v182 = vrcp.pop %v178
    %v183 = vmul.f32 %v173, %v182
    %v184 = vrcp.pop %v181
    %v185 = vmul.f32 %v175, %v184
    %v186 = vlaneseq
    %v187 = vand.u32 %v186, 127
    %vm188 = vcmp.ge.s32.totalorder %v187, 0
    %vm189 = vcmp.lt.s32.totalorder %v187, 32
    %vm190 = vmand %vm188, %vm189
    %v191 = vsel %vm190, 1, 0
    %vm192 = vcmp.eq.s32.totalorder %v191, 1
    %v193 = vsel %vm192, %v155, -inf
    %v194 = vsel %vm192, %v159, -inf
    %195 = vmax.xlane.f32.xlu0 %v193
    %v196 = vpop.xlane.xlu0 %195
    %197 = vmax.xlane.f32.xlu0 %v194
    %v198 = vpop.xlane.xlu0 %197
    %v199 = vsel %vm192, %v196, 0.0
    %v200 = vsel %vm192, %v198, 0.0
    %202 = vset.pattern.permute.xlu0 0
    %203 = vperm.xlu0 %202, %v183
    %v204 = vpop.permute.xlu0 %203
    %207 = vset.pattern.permute.xlu0 0
    %208 = vperm.xlu0 %207, %v185
    %v209 = vpop.permute.xlu0 %208
    %v211 = vsel %vm192, %v204, 0.0
    %v212 = vsel %vm192, %v209, 0.0
    %vm213 = vcmp.ge.s32.totalorder %v187, 32
    %vm214 = vcmp.lt.s32.totalorder %v187, 64
    %vm215 = vmand %vm213, %vm214
    %v216 = vsel %vm215, 1, 0
    %vm217 = vcmp.eq.s32.totalorder %v216, 1
    %v218 = vsel %vm217, %v155, -inf
    %v219 = vsel %vm217, %v159, -inf
    %220 = vmax.xlane.f32.xlu0 %v218
    %v221 = vpop.xlane.xlu0 %220
    %222 = vmax.xlane.f32.xlu0 %v219
    %v223 = vpop.xlane.xlu0 %222
    %v224 = vsel %vm217, %v221, %v199
    %v225 = vsel %vm217, %v223, %v200
    %226 = vset.pattern.permute.xlu0 1
    %227 = vperm.xlu0 %226, %v183
    %v228 = vpop.permute.xlu0 %227
    %230 = vset.pattern.permute.xlu0 1
    %231 = vperm.xlu0 %230, %v185
    %v232 = vpop.permute.xlu0 %231
    %v234 = vsel %vm217, %v228, %v211
    %v235 = vsel %vm217, %v232, %v212
    %vm236 = vcmp.ge.s32.totalorder %v187, 64
    %vm237 = vcmp.lt.s32.totalorder %v187, 96
    %vm238 = vmand %vm236, %vm237
    %v239 = vsel %vm238, 1, 0
    %vm240 = vcmp.eq.s32.totalorder %v239, 1
    %v241 = vsel %vm240, %v155, -inf
    %v242 = vsel %vm240, %v159, -inf
    %243 = vmax.xlane.f32.xlu0 %v241
    %v244 = vpop.xlane.xlu0 %243
    %245 = vmax.xlane.f32.xlu0 %v242
    %v246 = vpop.xlane.xlu0 %245
    %v247 = vsel %vm240, %v244, %v224
    %v248 = vsel %vm240, %v246, %v225
    %249 = vset.pattern.permute.xlu0 2
    %250 = vperm.xlu0 %249, %v183
    %v251 = vpop.permute.xlu0 %250
    %253 = vset.pattern.permute.xlu0 2
    %254 = vperm.xlu0 %253, %v185
    %v255 = vpop.permute.xlu0 %254
    %v257 = vsel %vm240, %v251, %v234
    %v258 = vsel %vm240, %v255, %v235
    %vm259 = vcmp.ge.s32.totalorder %v187, 96
    %vm260 = vcmp.lt.s32.totalorder %v187, 128
    %vm261 = vmand %vm259, %vm260
    %v262 = vsel %vm261, 1, 0
    %vm263 = vcmp.eq.s32.totalorder %v262, 1
    %v264 = vsel %vm263, %v155, -inf
    %v265 = vsel %vm263, %v159, -inf
    %266 = vmax.xlane.f32.xlu0 %v264
    %v267 = vpop.xlane.xlu0 %266
    %268 = vmax.xlane.f32.xlu0 %v265
    %v269 = vpop.xlane.xlu0 %268
    %v270 = vsel %vm263, %v267, %v247
    %v271 = vsel %vm263, %v269, %v248
    %272 = vset.pattern.permute.xlu0 3
    %273 = vperm.xlu0 %272, %v183
    %v274 = vpop.permute.xlu0 %273
    %276 = vset.pattern.permute.xlu0 3
    %277 = vperm.xlu0 %276, %v185
    %v278 = vpop.permute.xlu0 %277
    %v280 = vsel %vm263, %v274, %v257
    %v281 = vsel %vm263, %v278, %v258
    %vm282 = vcmp.ge.f32.partialorder %v155, %v270
    %vm283 = vcmp.ge.f32.partialorder %v159, %v271
    %v284 = vsel %vm282, %v280, 0.0
    %v285 = vsel %vm283, %v281, 0.0
    %v286 = vsub.f32 %v155, %v270
    %v287 = vsub.f32 %v159, %v271
    %v288 = vmul.f32 %v286, 1.442695
    %v289 = vpow.pop %v288
    %v290 = vmul.f32 %v287, 1.442695
    %v291 = vpow.pop %v290
    %v292 = vpack.c.bf16 %v285, %v284
    %v293 = vld [vmem:[#allocation7] sm:$0xf]
    %v294 = vld [vmem:[#allocation7 + $0x4] sm:$0xf]
    %v295 = vld [vmem:[#allocation7 + $0x8] sm:$0xf]
    %v296 = vld [vmem:[#allocation7 + $0xc] sm:$0xf]
    %v297 = vld [vmem:[#allocation7 + $0x10] sm:$0xf]
    %v298 = vld [vmem:[#allocation7 + $0x14] sm:$0xf]
    %v299 = vld [vmem:[#allocation7 + $0x18] sm:$0xf]
    %v300 = vld [vmem:[#allocation7 + $0x1c] sm:$0xf]
    %v301 = vld [vmem:[#allocation7 + $0x20] sm:$0xf]
    %v302 = vld [vmem:[#allocation7 + $0x24] sm:$0xf]
    %v303 = vld [vmem:[#allocation7 + $0x28] sm:$0xf]
    %v304 = vld [vmem:[#allocation7 + $0x2c] sm:$0xf]
    %v305 = vld [vmem:[#allocation7 + $0x30] sm:$0xf]
    %v306 = vld [vmem:[#allocation7 + $0x34] sm:$0xf]
    %v307 = vld [vmem:[#allocation7 + $0x38] sm:$0xf]
    %v308 = vld [vmem:[#allocation7 + $0x3c] sm:$0xf]
    %v309 = vld [vmem:[#allocation8] sm:$0xff]
    %v310 = vld [vmem:[#allocation8 + $0x8] sm:$0xff]
    %v311 = vld [vmem:[#allocation8 + $0x10] sm:$0xff]
    %v312 = vld [vmem:[#allocation8 + $0x18] sm:$0xff]
    %v313 = vld [vmem:[#allocation8 + $0x20] sm:$0xff]
    %v314 = vld [vmem:[#allocation8 + $0x28] sm:$0xff]
    %v315 = vld [vmem:[#allocation8 + $0x30] sm:$0xff]
    %v316 = vld [vmem:[#allocation8 + $0x38] sm:$0xff]
    %v317 = vld [vmem:[#allocation8 + $0x40] sm:$0xff]
    %v318 = vld [vmem:[#allocation8 + $0x48] sm:$0xff]
    %v319 = vld [vmem:[#allocation8 + $0x50] sm:$0xff]
    %v320 = vld [vmem:[#allocation8 + $0x58] sm:$0xff]
    %v321 = vld [vmem:[#allocation8 + $0x60] sm:$0xff]
    %v322 = vld [vmem:[#allocation8 + $0x68] sm:$0xff]
    %v323 = vld [vmem:[#allocation8 + $0x70] sm:$0xff]
    %v324 = vld [vmem:[#allocation8 + $0x78] sm:$0xff]
    %325 = vmatprep.subr.mxu0 0.0
    %326 = vmatpush1.msra.mxu0 %v309
    %327 = vmatprep.subr.mxu0 0.0
    %328 = vmatpush1.msra.mxu0 %v310
    %329 = vmatprep.subr.mxu0 0.0
    %330 = vmatpush1.msra.mxu0 %v311
    %331 = vmatprep.subr.mxu0 0.0
    %332 = vmatpush1.msra.mxu0 %v312
    %333 = vmatprep.subr.mxu0 0.0
    %334 = vmatpush1.msra.mxu0 %v313
    %335 = vmatprep.subr.mxu0 0.0
    %336 = vmatpush1.msra.mxu0 %v314
    %337 = vmatprep.subr.mxu0 0.0
    %338 = vmatpush1.msra.mxu0 %v315
    %339 = vmatprep.subr.mxu0 0.0
    %340 = vmatpush1.msra.mxu0 %v316
    %341 = vmatprep.subr.mxu0 0.0
    %342 = vmatpush1.msra.mxu0 %v317
    %343 = vmatprep.subr.mxu0 0.0
    %344 = vmatpush1.msra.mxu0 %v318
    %345 = vmatprep.subr.mxu0 0.0
    %346 = vmatpush1.msra.mxu0 %v319
    %347 = vmatprep.subr.mxu0 0.0
    %348 = vmatpush1.msra.mxu0 %v320
    %349 = vmatprep.subr.mxu0 0.0
    %350 = vmatpush1.msra.mxu0 %v321
    %351 = vmatprep.subr.mxu0 0.0
    %352 = vmatpush1.msra.mxu0 %v322
    %353 = vmatprep.subr.mxu0 0.0
    %354 = vmatpush1.msra.mxu0 %v323
    %355 = vmatprep.subr.mxu0 0.0
    %356 = vmatpush1.msra.mxu0 %v324
    %357 = vmatprep.subr.mxu0 0.0
    %358 = vmatpush1.msra.mxu0 0.0
    %359 = vmatprep.subr.mxu0 0.0
    %360 = vmatpush1.msra.mxu0 0.0
    %361 = vmatprep.subr.mxu0 0.0
    %362 = vmatpush1.msra.mxu0 0.0
    %363 = vmatprep.subr.mxu0 0.0
    %364 = vmatpush1.msra.mxu0 0.0
    %365 = vmatprep.subr.mxu0 0.0
    %366 = vmatpush1.msra.mxu0 0.0
    %367 = vmatprep.subr.mxu0 0.0
    %368 = vmatpush1.msra.mxu0 0.0
    %369 = vmatprep.subr.mxu0 0.0
    %370 = vmatpush1.msra.mxu0 0.0
    %371 = vmatprep.subr.mxu0 0.0
    %372 = vmatpush1.msra.mxu0 0.0
    %373 = vmatprep.subr.mxu0 0.0
    %374 = vmatpush1.msra.mxu0 0.0
    %375 = vmatprep.subr.mxu0 0.0
    %376 = vmatpush1.msra.mxu0 0.0
    %377 = vmatprep.subr.mxu0 0.0
    %378 = vmatpush1.msra.mxu0 0.0
    %379 = vmatprep.subr.mxu0 0.0
    %380 = vmatpush1.msra.mxu0 0.0
    %381 = vmatprep.subr.mxu0 0.0
    %382 = vmatpush1.msra.mxu0 0.0
    %383 = vmatprep.subr.mxu0 0.0
    %384 = vmatpush1.msra.mxu0 0.0
    %385 = vmatprep.subr.mxu0 0.0
    %386 = vmatpush1.msra.mxu0 0.0
    %387 = vmatprep.subr.mxu0 0.0
    %388 = vmatpush1.msra.mxu0 0.0
    %389 = vmatprep.mubr.f32.mxu0 0.0
    %390 = vmatmul.mubr.f32.gmra.mrb[0].mxu0 %v289
    %v391 = vpop.f32.mrb[0].mxu0
    %v392 = vadd.f32 0.0, %v391
    %v393 = vpop.f32.mrb[0].mxu0
    %394 = vmatprep.mubr.f32.mxu0 0.0
    %395 = vmatmul.mubr.f32.gmra.mrb[0].mxu0 %v291
    %v396 = vpop.f32.mrb[0].mxu0
    %v397 = vadd.f32 0.0, %v396
    %v398 = vpop.f32.mrb[0].mxu0
    %399 = vdwg.mxu0
    %v416 = vunpack.c.l.b16 %v293
    %v417 = vunpack.c.l.b16 %v294
    %v418 = vunpack.c.l.b16 %v295
    %v419 = vunpack.c.l.b16 %v296
    %v420 = vunpack.c.l.b16 %v297
    %v421 = vunpack.c.l.b16 %v298
    %v422 = vunpack.c.l.b16 %v299
    %v423 = vunpack.c.l.b16 %v300
    %v424 = vunpack.c.l.b16 %v301
    %v425 = vunpack.c.l.b16 %v302
    %v426 = vunpack.c.l.b16 %v303
    %v427 = vunpack.c.l.b16 %v304
    %v428 = vunpack.c.l.b16 %v305
    %v429 = vunpack.c.l.b16 %v306
    %v430 = vunpack.c.l.b16 %v307
    %v431 = vunpack.c.l.b16 %v308
    %v432 = vpack.c.b16 %v417, %v416
    %v433 = vpack.c.b16 %v419, %v418
    %v434 = vpack.c.b16 %v421, %v420
    %v435 = vpack.c.b16 %v423, %v422
    %v436 = vpack.c.b16 %v425, %v424
    %v437 = vpack.c.b16 %v427, %v426
    %v438 = vpack.c.b16 %v429, %v428
    %v439 = vpack.c.b16 %v431, %v430
    %448 = vmatprep.subr.bf16.mxu0 0
    %449 = vmatpush1.bf16.msra.mxu0 %v432
    %450 = vmatprep.subr.bf16.mxu0 0
    %451 = vmatpush1.bf16.msra.mxu0 %v433
    %452 = vmatprep.subr.bf16.mxu0 0
    %453 = vmatpush1.bf16.msra.mxu0 %v434
    %454 = vmatprep.subr.bf16.mxu0 0
    %455 = vmatpush1.bf16.msra.mxu0 %v435
    %456 = vmatprep.subr.bf16.mxu0 0
    %457 = vmatpush1.bf16.msra.mxu0 %v436
    %458 = vmatprep.subr.bf16.mxu0 0
    %459 = vmatpush1.bf16.msra.mxu0 %v437
    %460 = vmatprep.subr.bf16.mxu0 0
    %461 = vmatpush1.bf16.msra.mxu0 %v438
    %462 = vmatprep.subr.bf16.mxu0 0
    %463 = vmatpush1.bf16.msra.mxu0 %v439
    %464 = vmatprep.subr.bf16.mxu0 0
    %465 = vmatpush1.bf16.msra.mxu0 0
    %466 = vmatprep.subr.bf16.mxu0 0
    %467 = vmatpush1.bf16.msra.mxu0 0
    %468 = vmatprep.subr.bf16.mxu0 0
    %469 = vmatpush1.bf16.msra.mxu0 0
    %470 = vmatprep.subr.bf16.mxu0 0
    %471 = vmatpush1.bf16.msra.mxu0 0
    %472 = vmatprep.subr.bf16.mxu0 0
    %473 = vmatpush1.bf16.msra.mxu0 0
    %474 = vmatprep.subr.bf16.mxu0 0
    %475 = vmatpush1.bf16.msra.mxu0 0
    %476 = vmatprep.subr.bf16.mxu0 0
    %477 = vmatpush1.bf16.msra.mxu0 0
    %478 = vmatprep.subr.bf16.mxu0 0
    %479 = vmatpush1.bf16.msra.mxu0 0
    %480 = vmatprep.mubr.bf16.mxu0 0
    %481 = vmatmul.mubr.bf16.gmra.mrb[0].mxu0 %v292
    %v482 = vpop.f32.mrb[0].mxu0
    %v483 = vadd.f32 %v392, %v482
    %v484 = vpop.f32.mrb[0].mxu0
    %v485 = vpop.f32.mrb[0].mxu0
    %v486 = vadd.f32 %v397, %v485
    %v487 = vpop.f32.mrb[0].mxu0
    %488 = vdwg.mxu0
    %vm489 = vcmp.ge.s32.totalorder %v187, 16
    %vm490 = vcmp.lt.s32.totalorder %v187, 20
    %vm491 = vmand %vm489, %vm490
    %v492 = vlog2.pop %v483
    %v493 = vmul.f32 %v492, 0.6931472
    %v494 = vlog2.pop %v486
    %v495 = vmul.f32 %v494, 0.6931472
    %v496 = vsel %vm491, 1, 0
    %vm497 = vcmp.eq.s32.totalorder %v496, 1
    %v498 = vsel %vm497, %v493, %v483
    %v499 = vsel %vm497, %v495, %v486
    %500 = vst [vmem:[#allocation10] sm:$0xff] %v498
    %501 = vst [vmem:[#allocation10 + $0x8] sm:$0xff] %v499
    // Predicated region
    $region38: #{tpu_custom_call.1} parent=1 // pred_check
      _
    $region39: #{tpu_custom_call.1} parent=1 // pred_check_branch
      %503 = sbr.rel (0) target = $region41
    $region40: #{tpu_custom_call.1} parent=1 // pred_region
      %s505 = ssub.s32 256, 256
      %506 = vsyncadd [#allocation4], %s505
      %s507 = sshll.u32 [#allocation10], 4
      %s508 = int_to_ptr.vmem [resolvable:$true] %s507
      %513 = dma.vmem_to_hbm [thread:$0]  %s508, 256, %s5, [#allocation4], 128, 128, 8
    $region41: #{tpu_custom_call.1} parent=1 // pred_fallthru
      _
    // Predicated region
    $region42: #{tpu_custom_call.1} parent=1 // pred_check
      _
    $region43: #{tpu_custom_call.1} parent=1 // pred_check_branch
      %515 = sbr.rel (0) target = $region45
    $region44: #{tpu_custom_call.1} parent=1 // pred_region
      %516 = dma.done [#allocation4], 256
    $region45: #{tpu_custom_call.1} parent=1 // pred_fallthru
      _
    %517 = vsyncpa [#allocation3], 1
    %518 = vsyncpa [#allocation6], 1
    %519 = vsyncpa [#allocation9], 1
    %520 = vsyncpa [#allocation4], 1

</llo_original>
